<compile_context>
chip_gen: v6e
topology: v6e:2x2x1
jax: 0.10.0
libtpu: 0.0.40
codegen_flags: <defaults>
</compile_context>

<pallas_src>
import jax
import jax.numpy as jnp
from jax.experimental import pallas as pl
from jax.experimental.pallas import tpu as pltpu

_LANE = 128
_LANE_CANDIDATES = (4096, 2048, 1024, 512, 256, 128)


def _copy_kernel(x_ref, o_ref):
    # TODO(synk): placeholder body — a concrete subclass would replace this
    # pass-through with its real compute; BaseModel itself has none.
    o_ref[...] = x_ref[...]


def _hw_budgets():
    """Generation-aware (per-block bytes, scoped-vmem limit).

    v5e/v6e: 128 MiB physical VMEM  -> 8 MiB blocks, 64 MiB scoped limit.
    v7x:     64 MiB VMEM per TC     -> 4 MiB blocks, 32 MiB scoped limit
             (2 TCs each carry their own 4-buffer working set).
    Falls back to the conservative v7x setting if the query fails.
    """
    block_bytes = 4 * 1024 * 1024
    vmem_limit = 32 * 1024 * 1024
    try:
        vmem_cap = pltpu.get_tpu_info().vmem_capacity_bytes
        if vmem_cap >= 100 * 1024 * 1024:          # v5e / v6e class chips
            block_bytes = 8 * 1024 * 1024
            vmem_limit = 64 * 1024 * 1024
    except Exception:
        pass
    return block_bytes, vmem_limit


def pallas_identity(x: jax.Array, *, force_pallas: bool = False,
                    donate: bool = False) -> jax.Array:
    """Identity placeholder.

    Default (fast) path: return x — the true roofline for an identity op is
    zero HBM traffic and zero launch overhead.  `force_pallas=True` runs the
    lane-dense, pipelined Pallas copy that a concrete subclass would replace
    with its real compute.  `donate=True` aliases input->output (caller must
    donate the buffer) for in-place elementwise subclass kernels.
    """
    if not force_pallas:
        return x

    orig_shape = x.shape
    n = x.size
    itemsize = jnp.dtype(x.dtype).itemsize
    # dtype-aware sublane multiple: 8 (f32) / 16 (bf16) / 32 (int8/fp8)
    sublane = max(8, 32 // max(itemsize, 1))

    # ---- Lane-dense 2-D slab: largest 128-multiple dividing n exactly. ----
    lane_w = None
    for cand in _LANE_CANDIDATES:
        if n % cand == 0 and n // cand >= sublane:
            lane_w = cand
            break
    if lane_w is None:
        for cand in _LANE_CANDIDATES:
            if n % cand == 0:
                lane_w = cand
                break
    if lane_w is None:
        # TODO(synk): genuinely ragged size (n % 128 != 0) — a concrete
        # subclass would mask the last block; for the identity placeholder
        # the zero-cost path is correct and strictly faster than pad+slice.
        return x

    rows = n // lane_w
    x2d = x.reshape(rows, lane_w)              # metadata-only reshape

    # ---- Row tiling: biggest block within the per-generation budget. ------
    block_bytes, vmem_limit = _hw_budgets()
    bytes_per_row = lane_w * itemsize
    block_rows = max(sublane, block_bytes // bytes_per_row)
    block_rows = (block_rows // sublane) * sublane
    if block_rows >= rows:
        block_rows = rows                      # full extent (always legal)
        # Megacore (v7x): give both TensorCores work when there is enough
        # and the split keeps every block an exact sublane multiple.
        if rows >= 2 * sublane and rows % (2 * sublane) == 0:
            half = rows // 2
            if half % sublane == 0:
                block_rows = half

    grid = (pl.cdiv(rows, block_rows),)

    out2d = pl.pallas_call(
        _copy_kernel,
        out_shape=jax.ShapeDtypeStruct(x2d.shape, x2d.dtype),
        grid_spec=pltpu.PrefetchScalarGridSpec(
            num_scalar_prefetch=0,
            grid=grid,
            in_specs=[pl.BlockSpec((block_rows, lane_w), lambda i: (i, 0))],
            out_specs=pl.BlockSpec((block_rows, lane_w), lambda i: (i, 0)),
        ),
        compiler_params=pltpu.CompilerParams(
            # Disjoint output tiles per grid step -> parallel is correct and
            # lets v7x's two TensorCores split the copy; no-op on v5e/v6e.
            dimension_semantics=("parallel",),
            vmem_limit_bytes=vmem_limit,
        ),
        cost_estimate=pl.CostEstimate(
            flops=0, transcendentals=0, bytes_accessed=2 * n * itemsize),
        input_output_aliases=({0: 0} if donate else {}),
    )(x2d)

    return out2d.reshape(orig_shape)


class BaseModel:
    """JAX/Pallas mirror of the PyTorch BaseModel abstract base class."""

    def __init__(self):
        # No parameters; the reference __init__ only sets self.model = None.
        self.model = None

    def forward(self, x):
        # Exact semantics of the reference forward: it is abstract and raises.
        raise Exception("BaseModel forward method is not intended to be called.")


if __name__ == "__main__":
    key = jax.random.PRNGKey(0)
    # Small NCHW input consistent with a typical conv-style model input.
    x = jax.random.normal(key, (2, 4, 16, 16), dtype=jnp.float32)

    # 1) Verify the abstract-forward semantics are reproduced exactly.
    m = BaseModel()
    assert m.model is None
    try:
        m.forward(x)
        raise AssertionError("BaseModel.forward should have raised")
    except Exception as e:  # noqa: BLE001 - mirroring torch module's bare Exception
        assert "not intended to be called" in str(e)

    # 2) Default fast path: pure identity, no kernel launch, no HBM traffic.
    y_fast = pallas_identity(x)
    assert y_fast is x

    # 3) Run the Pallas placeholder kernel once and check it.
    #    (Equality assert forces a device->host sync; fine for a test,
    #     never include it in timing runs.)
    y = pallas_identity(x, force_pallas=True)
    y = jax.block_until_ready(y)
    assert y.shape == x.shape and y.dtype == x.dtype
    assert bool(jnp.all(y == x))

    print("KERNEL_OK")
</pallas_src>

<mosaic_0001>
module attributes {stable_mosaic.version = 11 : i64} {
  func.func @_copy_kernel(%arg0: i32, %arg1: memref<8x256xf32, #tpu.memory_space<vmem>>, %arg2: memref<8x256xf32, #tpu.memory_space<vmem>>) attributes {dimension_semantics = [#tpu.dimension_semantics<parallel>], iteration_bounds = array<i64: 1>, scalar_prefetch = 0 : i64, scratch_operands = 0 : i64, tpu.core_type = #tpu.core_type<tc>, window_params = [{transform_indices = @transform_0, window_bounds = array<i64: 8, 256>}, {transform_indices = @transform_1, window_bounds = array<i64: 8, 256>}]} {
    %c0 = arith.constant 0 : index
    %c0_0 = arith.constant 0 : index
    %0 = vector.load %arg1[%c0, %c0_0] : memref<8x256xf32, #tpu.memory_space<vmem>>, vector<8x256xf32>
    %c0_1 = arith.constant 0 : index
    %c0_2 = arith.constant 0 : index
    %1 = vector.load %arg2[%c0_1, %c0_2] : memref<8x256xf32, #tpu.memory_space<vmem>>, vector<8x256xf32>
    tpu.vector_store %arg2[%c0_1, %c0_2], %0 {strides = array<i32>} : memref<8x256xf32, #tpu.memory_space<vmem>>, vector<8x256xf32>,
    return
  }
  func.func @transform_0(%arg0: i32) -> (i32, i32) {
    %c0_i32 = arith.constant 0 : i32
    %c0_i32_0 = arith.constant 0 : i32
    return %arg0, %c0_i32 : i32, i32
  }
  func.func @transform_1(%arg0: i32) -> (i32, i32) {
    %c0_i32 = arith.constant 0 : i32
    %c0_i32_0 = arith.constant 0 : i32
    return %arg0, %c0_i32 : i32, i32
  }
}

</mosaic_0001>

<llo_original>
// kernel: tpu_custom_call.1
$region0: #{tpu_custom_call.1}
  #allocation0 [shape = 'u32[]', space=smem, size = 0x4, offset = 0x4, fixed_abs, tag = 'smem constant byte address 0x4 - core index']
  #allocation1 [shape = 'u32[144,128]{1,0:T(1,128)}', space=vmem, size = 0x12000, scoped, tag = 'internal scratch']
  %s0 = inlined_call_operand.hbm [shape: f32[8,256], index: 0, kind: input, shape index: {}]
  %s1 = inlined_call_operand.hbm [shape: f32[8,256], index: 1, kind: output, shape index: {}]
  %s2 = sld [smem:[#allocation0]]
  $region18: #{tpu_custom_call.1} parent=0
    _
  %s4 = ssub.s32 1, %s2
  %s5 = scalar_select 0, %s4, %s2
  $region1: #{tpu_custom_call.1} parent=0
    #allocation2 [shape = 'u8[8192]{0}', space=vmem, size = 0x2000, scoped, tag = 'input window, operand 0, single buffered']
    #allocation3 [shape = 's32[1]{0}', space=sflag, size = 0x4, scoped, tag = 'scoped memory for tpu_custom_call.1']
    #allocation4 [shape = 's32[1]{0}', space=sflag, size = 0x4, scoped, tag = 'scoped memory for tpu_custom_call.1']
    #allocation5 [shape = 'u8[8192]{0}', space=vmem, size = 0x2000, scoped, tag = 'output window, operand 0, single buffered']
    %6 = vsyncpa [#allocation3], 0
    %7 = vsyncpa [#allocation4], 0
    // Predicated region
    $region2: #{tpu_custom_call.1} parent=1 // pred_check
      _
    $region3: #{tpu_custom_call.1} parent=1 // pred_check_branch
      %9 = sbr.rel (0) target = $region5
    $region4: #{tpu_custom_call.1} parent=1 // pred_region
      %s11 = ssub.s32 256, 256
      %12 = vsyncadd [#allocation3], %s11
      %s14 = sshll.u32 [#allocation2], 4
      %s15 = int_to_ptr.vmem [resolvable:$true] %s14
      %17 = dma.hbm_to_vmem [thread:$0]  %s0, 256, %s15, [#allocation3]
    $region5: #{tpu_custom_call.1} parent=1 // pred_fallthru
      _
    // Predicated region
    $region6: #{tpu_custom_call.1} parent=1 // pred_check
      _
    $region7: #{tpu_custom_call.1} parent=1 // pred_check_branch
      %19 = sbr.rel (0) target = $region9
    $region8: #{tpu_custom_call.1} parent=1 // pred_region
      %20 = dma.done [#allocation3], 256
    $region9: #{tpu_custom_call.1} parent=1 // pred_fallthru
      _
    %v21 = vld [vmem:[#allocation2] sm:$0xff]
    %v22 = vld [vmem:[#allocation2 + $0x8] sm:$0xff]
    %23 = vst [vmem:[#allocation5] sm:$0xff] %v21
    %24 = vst [vmem:[#allocation5 + $0x8] sm:$0xff] %v22
    // Predicated region
    $region10: #{tpu_custom_call.1} parent=1 // pred_check
      _
    $region11: #{tpu_custom_call.1} parent=1 // pred_check_branch
      %26 = sbr.rel (0) target = $region13
    $region12: #{tpu_custom_call.1} parent=1 // pred_region
      %s28 = ssub.s32 256, 256
      %29 = vsyncadd [#allocation4], %s28
      %s31 = sshll.u32 [#allocation5], 4
      %s32 = int_to_ptr.vmem [resolvable:$true] %s31
      %34 = dma.vmem_to_hbm [thread:$0]  %s32, 256, %s1, [#allocation4]
    $region13: #{tpu_custom_call.1} parent=1 // pred_fallthru
      _
    // Predicated region
    $region14: #{tpu_custom_call.1} parent=1 // pred_check
      _
    $region15: #{tpu_custom_call.1} parent=1 // pred_check_branch
      %36 = sbr.rel (0) target = $region17
    $region16: #{tpu_custom_call.1} parent=1 // pred_region
      %37 = dma.done [#allocation4], 256
    $region17: #{tpu_custom_call.1} parent=1 // pred_fallthru
      _
    %38 = vsyncpa [#allocation3], 1
    %39 = vsyncpa [#allocation4], 1

</llo_original>
